<compile_context>
chip_gen: v6e
topology: v6e:2x2x1
jax: 0.10.0
libtpu: 0.0.40
codegen_flags: <defaults>
</compile_context>

<pallas_src>
import functools

import jax
import jax.numpy as jnp
from jax.experimental import pallas as pl
from jax.experimental.pallas import tpu as pltpu

LANES = 128


@functools.lru_cache(maxsize=None)
def _lane_roll_shifts():
    """Resolve the lane-rotation direction of pltpu.roll on this backend.

    Returns (s1, s2) such that pltpu.roll(x, s_k, axis=-1)[..., l] == x[..., l + k]
    (for lanes that do not wrap).  Probed once on the compiled path so the
    main kernel is correct under either rotate convention.
    """
    def probe(x_ref, o_ref):
        o_ref[...] = pltpu.roll(x_ref[...], 1, 1)

    with jax.ensure_compile_time_eval():
        x = jax.lax.broadcasted_iota(jnp.float32, (8, LANES), 1)
        y = pl.pallas_call(
            probe, out_shape=jax.ShapeDtypeStruct((8, LANES), jnp.float32))(x)
        y00 = float(jax.device_get(y)[0, 0])
    if y00 == float(LANES - 1):   # jnp.roll convention: shift of -k pulls lane l+k
        return LANES - 1, LANES - 2
    if y00 == 1.0:                # opposite convention: shift of +k pulls lane l+k
        return 1, 2
    raise RuntimeError(f"unexpected pltpu.roll semantics (probe value {y00})")


def _diou_partial_kernel(nelems_ref, pred_ref, target_ref, out_ref, *,
                         eps, tile_rows, s1, s2):
    # nelems_ref: SMEM (1,) int32        -- 4 * n (true element count)
    # pred_ref:   VMEM (tile_rows, 128)  -- lane-interleaved x1,y1,x2,y2
    # target_ref: VMEM (tile_rows, 128)
    # out_ref:    VMEM (8, 128)          -- this grid step's partial sums
    p = pred_ref[...]
    t = target_ref[...]

    def nxt1(x):   # lane l sees lane l + 1
        return pltpu.roll(x, s1, 1)

    def nxt2(x):   # lane l sees lane l + 2
        return pltpu.roll(x, s2, 1)

    mx = jnp.maximum(p, t)                    # per-coordinate max(pred, target)
    mn = jnp.minimum(p, t)                    # per-coordinate min(pred, target)

    # x-quantities land on lanes l%4==0, y-quantities on lanes l%4==1.
    wh = jnp.maximum(nxt2(mn) - mx, 0.0)      # intersection  w | h
    enc = jnp.maximum(nxt2(mx) - mn, 0.0)     # enclosing box cw | ch
    dp = nxt2(p) - p                          # pred   x2-x1 | y2-y1
    dt = nxt2(t) - t                          # target x2-x1 | y2-y1
    d0 = t - p
    ctr = d0 + nxt2(d0)                       # (tx1+tx2)-(px1+px2) | y-analog

    # pair lane l (x-quantity) with lane l+1 (y-quantity); result on l%4==0.
    overlap = wh * nxt1(wh)
    ap = dp * nxt1(dp)
    ag = dt * nxt1(dt)
    enc_sq = enc * enc
    c2 = enc_sq + nxt1(enc_sq) + eps
    d_sq = ctr * ctr
    rho2 = (d_sq + nxt1(d_sq)) * 0.25
    union = ap + ag - overlap + eps

    def recip(x):
        # EUP estimate + one Newton-Raphson step; keeps the heavy divide off
        # the VALU slots while staying at f32 accuracy.
        r = pl.reciprocal(x, approx=True)
        return r * (2.0 - x * r)

    # loss = 1 - iou + rho2 / c2   (meaningful only on lanes l % 4 == 0)
    loss = 1.0 - overlap * recip(union) + rho2 * recip(c2)

    lane = jax.lax.broadcasted_iota(jnp.int32, (tile_rows, LANES), 1)
    loss = jnp.where((lane & 3) == 0, loss, 0.0)

    tile_elems = tile_rows * LANES
    base = pl.program_id(0) * tile_elems
    n_elems = nelems_ref[0]

    def store(x):
        # sublane-group reduction only: full-vreg adds + one full-vreg store.
        out_ref[...] = x.reshape(tile_rows // 8, 8, LANES).sum(axis=0)

    is_partial = base + tile_elems > n_elems

    @pl.when(jnp.logical_not(is_partial))
    def _():
        store(loss)            # interior tile: every box valid, no mask work

    @pl.when(is_partial)
    def _():                   # only the tail tile builds the validity mask
        row = jax.lax.broadcasted_iota(jnp.int32, (tile_rows, LANES), 0)
        local = row * LANES + lane
        store(jnp.where(local < n_elems - base, loss, 0.0))


def _round_up(x, m):
    return ((x + m - 1) // m) * m


def diou_loss_forward(pred, target, eps=1e-6, loss_weight=1.0):
    """DIoULoss.forward with weight=None, avg_factor=None, reduction='mean'."""
    # TODO(synk): weight / avg_factor / reduction_override branches of the
    # PyTorch module are not implemented; only the default mean path is.
    assert pred.shape == target.shape and pred.ndim == 2 and pred.shape[1] == 4
    n = pred.shape[0]
    # NOTE: n == 0 gives NaN (mean over empty tensor), matching torch.mean([]).
    pred = pred.astype(jnp.float32)
    target = target.astype(jnp.float32)

    n_elems = 4 * n
    rows = -(-n_elems // LANES)            # ceil(4n / 128)
    rows_alloc = max(rows, 8)
    alloc_elems = rows_alloc * LANES

    def as_tiles(x):
        flat = x.reshape(-1)               # free: (n, 4) is contiguous
        if alloc_elems != n_elems:
            # one extra pass only when 4n is not a multiple of 128 (tail pad);
            # the aligned case is a pure bitcast (no data movement).
            flat = jnp.pad(flat, (0, alloc_elems - n_elems))
        return flat.reshape(rows_alloc, LANES)

    pred_t = as_tiles(pred)
    target_t = as_tiles(target)

    # Tile sizing: up to 4096 rows x 128 lanes = 2 MiB / input / grid step
    # (8 MiB double-buffered -> fits the scoped-VMEM defaults on v5e/v6e/v7x).
    # For > 8192 boxes force >= 2 grid steps so both v7x TensorCores run.
    MAX_TILE_ROWS = 4096
    TWO_STEP_ROWS = 256
    if rows_alloc > TWO_STEP_ROWS:
        want = _round_up(-(-rows_alloc // 2), 8)
    else:
        want = _round_up(rows_alloc, 8)
    tile_rows = max(8, min(MAX_TILE_ROWS, want, 8 * (rows_alloc // 8)))
    grid = -(-rows_alloc // tile_rows)

    s1, s2 = _lane_roll_shifts()
    kernel = functools.partial(
        _diou_partial_kernel, eps=float(eps), tile_rows=tile_rows, s1=s1, s2=s2)

    partials = pl.pallas_call(
        kernel,
        out_shape=jax.ShapeDtypeStruct((grid * 8, LANES), jnp.float32),
        grid_spec=pltpu.PrefetchScalarGridSpec(
            num_scalar_prefetch=1,
            grid=(grid,),
            in_specs=[
                pl.BlockSpec((tile_rows, LANES), lambda i, n_ref: (i, 0)),
                pl.BlockSpec((tile_rows, LANES), lambda i, n_ref: (i, 0)),
            ],
            out_specs=pl.BlockSpec((8, LANES), lambda i, n_ref: (i, 0)),
        ),
        compiler_params=pltpu.CompilerParams(
            dimension_semantics=("parallel",)),
    )(jnp.array([n_elems], dtype=jnp.int32), pred_t, target_t)

    # reduction='mean' over the n valid boxes, then loss_weight scaling.
    total = jnp.sum(partials)
    return loss_weight * total / n


def _diou_loss_ref(pred, target, eps=1e-6):
    lt = jnp.maximum(pred[:, :2], target[:, :2])
    rb = jnp.minimum(pred[:, 2:], target[:, 2:])
    wh = jnp.maximum(rb - lt, 0.0)
    overlap = wh[:, 0] * wh[:, 1]
    ap = (pred[:, 2] - pred[:, 0]) * (pred[:, 3] - pred[:, 1])
    ag = (target[:, 2] - target[:, 0]) * (target[:, 3] - target[:, 1])
    union = ap + ag - overlap + eps
    ious = overlap / union
    enc_lt = jnp.minimum(pred[:, :2], target[:, :2])
    enc_rb = jnp.maximum(pred[:, 2:], target[:, 2:])
    enc_wh = jnp.maximum(enc_rb - enc_lt, 0.0)
    c2 = enc_wh[:, 0] ** 2 + enc_wh[:, 1] ** 2 + eps
    left = (target[:, 0] + target[:, 2] - (pred[:, 0] + pred[:, 2])) ** 2 / 4
    right = (target[:, 1] + target[:, 3] - (pred[:, 1] + pred[:, 3])) ** 2 / 4
    rho2 = left + right
    loss = 1 - (ious - rho2 / c2)
    return jnp.mean(loss)


def _make_boxes(key, n):
    k1, k2, k3, k4 = jax.random.split(key, 4)
    p_xy = jax.random.uniform(k1, (n, 2), minval=0.0, maxval=10.0)
    p_wh = jax.random.uniform(k2, (n, 2), minval=1.0, maxval=5.0)
    pred = jnp.concatenate([p_xy, p_xy + p_wh], axis=1)
    t_xy = jax.random.uniform(k3, (n, 2), minval=0.0, maxval=10.0)
    t_wh = jax.random.uniform(k4, (n, 2), minval=1.0, maxval=5.0)
    target = jnp.concatenate([t_xy, t_xy + t_wh], axis=1)
    return pred, target


if __name__ == "__main__":
    key = jax.random.PRNGKey(0)
    keys = jax.random.split(key, 4)

    # n=8     : small case consistent with the module's (n, 4) inputs
    # n=1000  : misaligned n (tail pad) + masked tile, single grid step
    # n=1024  : aligned zero-copy path, final tile fully valid (fast branch)
    # n=10000 : tail pad + 2 grid steps (megacore split) + ragged/masked tail
    for n, k in zip((8, 1000, 1024, 10000), keys):
        pred, target = _make_boxes(k, n)
        out = diou_loss_forward(pred, target, eps=1e-6, loss_weight=1.0)
        out = jax.block_until_ready(out)
        ref = _diou_loss_ref(pred, target, eps=1e-6)
        assert jnp.allclose(out, ref, rtol=1e-5, atol=1e-5), (n, out, ref)

    print("KERNEL_OK")
</pallas_src>

<mosaic_0001>
module attributes {stable_mosaic.version = 11 : i64} {
  func.func @probe(%arg0: memref<8x128xf32, #tpu.memory_space<vmem>>, %arg1: memref<8x128xf32, #tpu.memory_space<vmem>>) attributes {dimension_semantics = [], scalar_prefetch = 0 : i64, scratch_operands = 0 : i64, tpu.core_type = #tpu.core_type<tc>} {
    %c0 = arith.constant 0 : index
    %c0_0 = arith.constant 0 : index
    %0 = vector.load %arg0[%c0, %c0_0] : memref<8x128xf32, #tpu.memory_space<vmem>>, vector<8x128xf32>
    %c1_i32 = arith.constant 1 : i32
    %1 = tpu.dynamic_rotate %0 by %c1_i32 dim 1 : vector<8x128xf32>, i32 -> vector<8x128xf32>
    %c0_1 = arith.constant 0 : index
    %c0_2 = arith.constant 0 : index
    %2 = vector.load %arg1[%c0_1, %c0_2] : memref<8x128xf32, #tpu.memory_space<vmem>>, vector<8x128xf32>
    tpu.vector_store %arg1[%c0_1, %c0_2], %1 {strides = array<i32>} : memref<8x128xf32, #tpu.memory_space<vmem>>, vector<8x128xf32>,
    return
  }
}

</mosaic_0001>

<llo_original>
// kernel: tpu_custom_call.1
$region0: #{tpu_custom_call.1}
  #allocation0 [shape = 'u32[]', space=smem, size = 0x4, offset = 0x4, fixed_abs, tag = 'smem constant byte address 0x4 - core index']
  #allocation1 [shape = 'u32[144,128]{1,0:T(1,128)}', space=vmem, size = 0x12000, scoped, tag = 'internal scratch']
  %s0 = inlined_call_operand.hbm [shape: f32[8,128], index: 0, kind: input, shape index: {}]
  %s1 = inlined_call_operand.hbm [shape: f32[8,128], index: 1, kind: output, shape index: {}]
  %s2 = sld [smem:[#allocation0]]
  $region18: #{tpu_custom_call.1} parent=0
    _
  %s4 = ssub.s32 1, %s2
  %s5 = scalar_select 0, %s4, %s2
  $region1: #{tpu_custom_call.1} parent=0
    #allocation2 [shape = 'u8[4096]{0}', space=vmem, size = 0x1000, scoped, tag = 'input window, operand 0, single buffered']
    #allocation3 [shape = 's32[1]{0}', space=sflag, size = 0x4, scoped, tag = 'scoped memory for tpu_custom_call.1']
    #allocation4 [shape = 's32[1]{0}', space=sflag, size = 0x4, scoped, tag = 'scoped memory for tpu_custom_call.1']
    #allocation5 [shape = 'u8[4096]{0}', space=vmem, size = 0x1000, scoped, tag = 'output window, operand 0, single buffered']
    %6 = vsyncpa [#allocation3], 0
    %7 = vsyncpa [#allocation4], 0
    // Predicated region
    $region2: #{tpu_custom_call.1} parent=1 // pred_check
      _
    $region3: #{tpu_custom_call.1} parent=1 // pred_check_branch
      %9 = sbr.rel (0) target = $region5
    $region4: #{tpu_custom_call.1} parent=1 // pred_region
      %s11 = ssub.s32 128, 128
      %12 = vsyncadd [#allocation3], %s11
      %s14 = sshll.u32 [#allocation2], 4
      %s15 = int_to_ptr.vmem [resolvable:$true] %s14
      %17 = dma.hbm_to_vmem [thread:$0]  %s0, 128, %s15, [#allocation3]
    $region5: #{tpu_custom_call.1} parent=1 // pred_fallthru
      _
    // Predicated region
    $region6: #{tpu_custom_call.1} parent=1 // pred_check
      _
    $region7: #{tpu_custom_call.1} parent=1 // pred_check_branch
      %19 = sbr.rel (0) target = $region9
    $region8: #{tpu_custom_call.1} parent=1 // pred_region
      %20 = dma.done [#allocation3], 128
    $region9: #{tpu_custom_call.1} parent=1 // pred_fallthru
      _
    %v21 = vld [vmem:[#allocation2] sm:$0xff]
    %22 = vrot.lane.b32.xlu0 %v21, 1
    %v23 = vpop.permute.xlu0 %22
    %24 = vst [vmem:[#allocation5] sm:$0xff] %v23
    // Predicated region
    $region10: #{tpu_custom_call.1} parent=1 // pred_check
      _
    $region11: #{tpu_custom_call.1} parent=1 // pred_check_branch
      %26 = sbr.rel (0) target = $region13
    $region12: #{tpu_custom_call.1} parent=1 // pred_region
      %s28 = ssub.s32 128, 128
      %29 = vsyncadd [#allocation4], %s28
      %s31 = sshll.u32 [#allocation5], 4
      %s32 = int_to_ptr.vmem [resolvable:$true] %s31
      %34 = dma.vmem_to_hbm [thread:$0]  %s32, 128, %s1, [#allocation4]
    $region13: #{tpu_custom_call.1} parent=1 // pred_fallthru
      _
    // Predicated region
    $region14: #{tpu_custom_call.1} parent=1 // pred_check
      _
    $region15: #{tpu_custom_call.1} parent=1 // pred_check_branch
      %36 = sbr.rel (0) target = $region17
    $region16: #{tpu_custom_call.1} parent=1 // pred_region
      %37 = dma.done [#allocation4], 128
    $region17: #{tpu_custom_call.1} parent=1 // pred_fallthru
      _
    %38 = vsyncpa [#allocation3], 1
    %39 = vsyncpa [#allocation4], 1

</llo_original>
